<compile_context>
chip_gen: v7x
topology: tpu7x:2x2x1
jax: 0.10.0
libtpu: 0.0.40
codegen_flags: <defaults>
</compile_context>

<pallas_src>
import functools

import jax
import jax.numpy as jnp
import numpy as np
from jax.experimental import pallas as pl
from jax.experimental.pallas import tpu as pltpu

_NEG_LARGE = -1e30   # finite stand-in for -inf (keeps the online softmax NaN-free)
_LANE = 128


def _round_up(a, m):
    return -(-a // m) * m


def _sublanes(dtype):
    return max(8, 32 // jnp.dtype(dtype).itemsize)   # f32 -> 8, bf16 -> 16, i8 -> 32


def _x_buf_bytes(b, tl, c, dtype):
    d = jnp.dtype(dtype)
    return b * _round_up(tl, _sublanes(d)) * _round_up(c, _LANE) * d.itemsize


def _total_vmem_bytes(b, tl, c, x_dtype, has_mask):
    """Approximate VMEM footprint (lane/sublane padding + double buffering)."""
    d = jnp.dtype(x_dtype)
    c_pad = _round_up(c, _LANE)
    total = 2 * _x_buf_bytes(b, tl, c, x_dtype)                         # x (dbl buf)
    if has_mask:
        total += 2 * _round_up(b, 16) * _round_up(tl, _LANE) * 2        # bf16 mask
    total += 2 * _round_up(b, 8) * c_pad * d.itemsize                   # out block
    total += _round_up(b, 8) * c_pad * 4                                # acc scratch
    total += 2 * _round_up(b, 8) * _LANE * 4                            # m / l scratch
    total += 8 * c_pad * 4                                              # weight
    return int(total)


def _choose_tiles(n, L, c, x_dtype, has_mask, budget):
    """Pick (B, TL).  B is n (n <= 8) or a multiple of 8; TL is L or a multiple
    of 128, so every block dim is 8/128-aligned or spans the full array dim."""
    total = lambda b, tl: _total_vmem_bytes(b, tl, c, x_dtype, has_mask)

    if n <= 8:
        b_candidates = [n]
    else:
        # Prefer >= 2 batch blocks so the "parallel" axis can shard across
        # TensorCores (v7x megacore); largest useful B is ~ceil(n/2), 8-aligned.
        b_pref = _round_up(-(-n // 2), 8)
        b_candidates = list(range(b_pref, 0, -8))

    for b in b_candidates:                       # full-L tiles if they fit
        if total(b, L) <= budget:
            return b, L

    # Even the smallest batch block does not fit at full L: tile L instead.
    b = n if n <= 8 else 8
    tl = _LANE
    l_cap = _round_up(L, _LANE)
    while tl + _LANE <= l_cap and total(b, tl + _LANE) <= budget:
        tl += _LANE
    if tl >= L:
        tl = L
    return b, tl


def _attention2d_kernel(*refs, has_mask, tl, total_l, ragged_l):
    """One (batch-block, L-tile) step of masked global softmax pooling.

    refs (in order):
      x_ref    (B, TL, C)   input tile, native dtype
      w_ref    (1, C)       1x1-conv weight (f32)
      mask_ref (B, TL)      bf16 0/1 keep-mask          [only if has_mask]
      out_ref  (B, 1, C)    pooled output (written on the last L tile)
      m/l/acc  scratch      online-softmax running max / denom / weighted sum
    """
    if has_mask:
        x_ref, w_ref, mask_ref, out_ref, m_sc, l_sc, acc_sc = refs
    else:
        x_ref, w_ref, out_ref, m_sc, l_sc, acc_sc = refs
        mask_ref = None

    li = pl.program_id(1)

    @pl.when(li == 0)
    def _init():
        m_sc[...] = jnp.full(m_sc.shape, _NEG_LARGE, jnp.float32)
        l_sc[...] = jnp.zeros(l_sc.shape, jnp.float32)
        acc_sc[...] = jnp.zeros(acc_sc.shape, jnp.float32)

    x = x_ref[...]                                    # (B, TL, C), native dtype
    b = x.shape[0]

    keep = None
    if ragged_l:
        # Positions past the true L in the last tile hold unspecified data:
        # zero them (protects the MXU contraction) and force them masked.
        pos = li * tl + jax.lax.broadcasted_iota(jnp.int32, (b, tl), 1)
        valid = pos < total_l                         # (B, TL) bool
        x = jnp.where(valid[:, :, None], x, jnp.zeros((), x.dtype))
        keep = valid
    if has_mask:
        mk = mask_ref[...].astype(jnp.float32) > 0.0
        keep = mk if keep is None else jnp.logical_and(keep, mk)

    # 1x1 conv logits (C -> 1): VPU multiply + lane reduce, f32 result.
    logits = jnp.sum(x * w_ref[0], axis=-1)           # (B, TL) f32
    if keep is not None:
        logits = jnp.where(keep, logits, _NEG_LARGE)

    # Online softmax across L tiles (dense (B, TL) layouts).
    m_prev = m_sc[...]                                              # (B, 1)
    m_new = jnp.maximum(m_prev, jnp.max(logits, axis=-1, keepdims=True))
    alpha = jnp.exp(m_prev - m_new)                                 # (B, 1)
    p = jnp.exp(logits - m_new)                                     # (B, TL) f32
    l_sc[...] = alpha * l_sc[...] + jnp.sum(p, axis=-1, keepdims=True)

    # Weighted pooling on the MXU: per row, (1, TL) @ (TL, C) with f32 accumulate
    # (flash-attention 'bqk,bkd->bqd' pattern with q = 1); x stays native dtype.
    pooled = jnp.einsum("bql,blc->bqc", p.astype(x.dtype)[:, None, :], x,
                        preferred_element_type=jnp.float32)         # (B, 1, C)
    acc_sc[...] = alpha[:, :, None] * acc_sc[...] + pooled
    m_sc[...] = m_new

    @pl.when(li == pl.num_programs(1) - 1)
    def _finalize():
        inv_l = pl.reciprocal(l_sc[...], approx=False)              # (B, 1)
        out = acc_sc[...] * inv_l[:, :, None]                       # (B, 1, C)
        # Rows with no valid position: softmax over all -inf -> NaN (match ref).
        out = jnp.where(m_sc[...][:, :, None] > 0.5 * _NEG_LARGE, out, jnp.nan)
        out_ref[...] = out.astype(out_ref.dtype)


def attention2d(x, w, b=None, input_mask=None, *, vmem_budget_bytes=24 * 1024 * 1024):
    """Pallas TPU forward of Attention2d.

    x: (N, ell, ell, C) channels-last.  w: (C,) 1x1-conv weight, b: (1,) bias
    (accepted for API parity but unused: softmax shift-invariance makes it a
    no-op).  input_mask: optional (N, ell, ell), nonzero = keep.  Returns (N, C).
    """
    del b  # bias cannot affect the softmax-pooled output
    n, ell_r, ell_c, c = x.shape
    L = ell_r * ell_c
    x_flat = x.reshape(n, L, c)

    has_mask = input_mask is not None
    B, TL = _choose_tiles(n, L, c, x.dtype, has_mask, vmem_budget_bytes)
    grid = (pl.cdiv(n, B), pl.cdiv(L, TL))          # L-tile (reduction) axis last
    ragged_l = (L % TL) != 0

    w2 = w.reshape(1, c).astype(jnp.float32)

    in_specs = [
        pl.BlockSpec((B, TL, c), lambda bi, li: (bi, li, 0)),   # x
        pl.BlockSpec((1, c), lambda bi, li: (0, 0)),            # weight
    ]
    args = [x_flat, w2]
    if has_mask:
        mask = (input_mask.reshape(n, L) != 0).astype(jnp.bfloat16)
        in_specs.append(pl.BlockSpec((B, TL), lambda bi, li: (bi, li)))
        args.append(mask)

    kernel = functools.partial(_attention2d_kernel, has_mask=has_mask, tl=TL,
                               total_l=L, ragged_l=ragged_l)

    vmem_used = _total_vmem_bytes(B, TL, c, x.dtype, has_mask)
    vmem_limit = int(min(48 * 2**20, max(24 * 2**20, int(vmem_used * 1.5) + (2 << 20))))

    out = pl.pallas_call(
        kernel,
        out_shape=jax.ShapeDtypeStruct((n, 1, c), x.dtype),
        grid=grid,
        in_specs=in_specs,
        out_specs=pl.BlockSpec((B, 1, c), lambda bi, li: (bi, 0, 0)),
        scratch_shapes=[
            pltpu.VMEM((B, 1), jnp.float32),        # running max
            pltpu.VMEM((B, 1), jnp.float32),        # running denominator
            pltpu.VMEM((B, 1, c), jnp.float32),     # running weighted sum
        ],
        compiler_params=pltpu.CompilerParams(
            dimension_semantics=("parallel", "arbitrary"),
            vmem_limit_bytes=vmem_limit),
    )(*args)
    return out.reshape(n, c)


def attention2d_ref(x, w, b, input_mask=None):
    """Pure-JAX reference mirroring the PyTorch forward."""
    n, ell_r, ell_c, c = x.shape
    L = ell_r * ell_c
    xf = x.reshape(n, L, c).astype(jnp.float32)
    logits = jnp.einsum("nlc,c->nl", xf, w.astype(jnp.float32)) + b[0]
    if input_mask is not None:
        logits = jnp.where(input_mask.reshape(n, L) != 0, logits, -jnp.inf)
    attn = jax.nn.softmax(logits, axis=-1)
    return jnp.sum(attn[..., None] * xf, axis=1)


if __name__ == "__main__":
    key = jax.random.PRNGKey(0)
    k_x, k_w, k_b, k_m, k_x2, k_m2 = jax.random.split(key, 6)

    # --- primary small test: N=2, ell=8 (L=64), C=32 --------------------------
    n, ell, in_dim = 2, 8, 32
    x = jax.random.normal(k_x, (n, ell, ell, in_dim), jnp.float32)
    w = jax.random.normal(k_w, (in_dim,), jnp.float32) * 0.1
    bias = jax.random.normal(k_b, (1,), jnp.float32) * 0.1
    mask = (jax.random.uniform(k_m, (n, ell, ell)) > 0.3).astype(jnp.float32)
    mask = mask.at[:, 0, 0].set(1.0)  # guarantee >=1 valid position per row

    out = jax.block_until_ready(attention2d(x, w, bias, mask))
    ref = attention2d_ref(x, w, bias, mask)
    np.testing.assert_allclose(np.asarray(out), np.asarray(ref), atol=5e-3, rtol=5e-3)

    out_nm = jax.block_until_ready(attention2d(x, w, bias, None))
    ref_nm = attention2d_ref(x, w, bias, None)
    np.testing.assert_allclose(np.asarray(out_nm), np.asarray(ref_nm),
                               atol=5e-3, rtol=5e-3)

    # --- multi-block path: batch blocking + ragged N + ragged L tiles ---------
    n2, ell2 = 20, 18                       # L = 324 (not a multiple of 128), C = 32
    x2 = jax.random.normal(k_x2, (n2, ell2, ell2, in_dim), jnp.float32)
    mask2 = (jax.random.uniform(k_m2, (n2, ell2, ell2)) > 0.3).astype(jnp.float32)
    mask2 = mask2.at[:, 0, 0].set(1.0)
    small_budget = 2 * 1024 * 1024          # force B=8, TL=128 (3x3 grid)
    out2 = jax.block_until_ready(
        attention2d(x2, w, bias, mask2, vmem_budget_bytes=small_budget))
    ref2 = attention2d_ref(x2, w, bias, mask2)
    np.testing.assert_allclose(np.asarray(out2), np.asarray(ref2), atol=5e-3, rtol=5e-3)

    out2_nm = jax.block_until_ready(
        attention2d(x2, w, bias, None, vmem_budget_bytes=small_budget))
    ref2_nm = attention2d_ref(x2, w, bias, None)
    np.testing.assert_allclose(np.asarray(out2_nm), np.asarray(ref2_nm),
                               atol=5e-3, rtol=5e-3)

    print("KERNEL_OK")
</pallas_src>

<mosaic_0001>
module attributes {stable_mosaic.version = 11 : i64} {
  func.func @_attention2d_kernel(%arg0: i32, %arg1: i32, %arg2: memref<2x64x32xf32, #tpu.memory_space<vmem>>, %arg3: memref<1x32xf32, #tpu.memory_space<vmem>>, %arg4: memref<2x64xbf16, #tpu.memory_space<vmem>>, %arg5: memref<2x1x32xf32, #tpu.memory_space<vmem>>, %arg6: memref<2x1xf32, #tpu.memory_space<vmem>>, %arg7: memref<2x1xf32, #tpu.memory_space<vmem>>, %arg8: memref<2x1x32xf32, #tpu.memory_space<vmem>>) attributes {dimension_semantics = [#tpu.dimension_semantics<parallel>, #tpu.dimension_semantics<arbitrary>], iteration_bounds = array<i64: 1, 1>, scalar_prefetch = 0 : i64, scratch_operands = 3 : i64, tpu.core_type = #tpu.core_type<tc>, window_params = [{transform_indices = @transform_0, window_bounds = array<i64: 2, 64, 32>}, {pipeline_mode = #tpu.pipeline_mode<synchronous>, transform_indices = @transform_1, window_bounds = array<i64: 1, 32>}, {transform_indices = @transform_2, window_bounds = array<i64: 2, 64>}, {transform_indices = @transform_3, window_bounds = array<i64: 2, 1, 32>}]} {
    %c0_i32 = arith.constant 0 : i32
    %0 = arith.cmpi eq, %arg1, %c0_i32 : i32
    %1 = arith.extui %0 : i1 to i32
    %c0_i32_0 = arith.constant 0 : i32
    %2 = arith.cmpi ne, %1, %c0_i32_0 : i32
    scf.if %2 {
      %cst_28 = arith.constant -1.000000e+30 : f32
      %43 = vector.broadcast %cst_28 : f32 to vector<2x1xf32>
      %c0_29 = arith.constant 0 : index
      %c0_30 = arith.constant 0 : index
      %44 = vector.load %arg6[%c0_29, %c0_30] : memref<2x1xf32, #tpu.memory_space<vmem>>, vector<2x1xf32>
      tpu.vector_store %arg6[%c0_29, %c0_30], %43 {strides = array<i32>} : memref<2x1xf32, #tpu.memory_space<vmem>>, vector<2x1xf32>,
      %cst_31 = arith.constant 0.000000e+00 : f32
      %45 = vector.broadcast %cst_31 : f32 to vector<2x1xf32>
      %c0_32 = arith.constant 0 : index
      %c0_33 = arith.constant 0 : index
      %46 = vector.load %arg7[%c0_32, %c0_33] : memref<2x1xf32, #tpu.memory_space<vmem>>, vector<2x1xf32>
      tpu.vector_store %arg7[%c0_32, %c0_33], %45 {strides = array<i32>} : memref<2x1xf32, #tpu.memory_space<vmem>>, vector<2x1xf32>,
      %cst_34 = arith.constant 0.000000e+00 : f32
      %47 = vector.broadcast %cst_34 : f32 to vector<2x1x32xf32>
      %c0_35 = arith.constant 0 : index
      %c0_36 = arith.constant 0 : index
      %c0_37 = arith.constant 0 : index
      %48 = vector.load %arg8[%c0_35, %c0_36, %c0_37] : memref<2x1x32xf32, #tpu.memory_space<vmem>>, vector<2x1x32xf32>
      tpu.vector_store %arg8[%c0_35, %c0_36, %c0_37], %47 {strides = array<i32>} : memref<2x1x32xf32, #tpu.memory_space<vmem>>, vector<2x1x32xf32>,
    } else {
    }
    %c0 = arith.constant 0 : index
    %c0_1 = arith.constant 0 : index
    %c0_2 = arith.constant 0 : index
    %3 = vector.load %arg2[%c0, %c0_1, %c0_2] : memref<2x64x32xf32, #tpu.memory_space<vmem>>, vector<2x64x32xf32>
    %c0_3 = arith.constant 0 : index
    %c0_4 = arith.constant 0 : index
    %4 = vector.load %arg4[%c0_3, %c0_4] : memref<2x64xbf16, #tpu.memory_space<vmem>>, vector<2x64xbf16>
    %5 = arith.extf %4 : vector<2x64xbf16> to vector<2x64xf32>
    %cst = arith.constant 0.000000e+00 : f32
    %6 = vector.broadcast %cst : f32 to vector<2x64xf32>
    %7 = arith.cmpf ogt, %5, %6 : vector<2x64xf32>
    %c0_5 = arith.constant 0 : index
    %c0_6 = arith.constant 0 : index
    %8 = vector.load %arg3[%c0_5, %c0_6] : memref<1x32xf32, #tpu.memory_space<vmem>>, vector<1x32xf32>
    %9 = vector.shape_cast %8 : vector<1x32xf32> to vector<32xf32>
    %10 = vector.shape_cast %9 : vector<32xf32> to vector<1x1x32xf32>
    %11 = vector.broadcast %10 : vector<1x1x32xf32> to vector<2x64x32xf32>
    %12 = arith.mulf %3, %11 : vector<2x64x32xf32>
    %cst_7 = arith.constant dense<0.000000e+00> : vector<2x64xf32>
    %13 = vector.multi_reduction <add>, %12, %cst_7 [2] : vector<2x64x32xf32> to vector<2x64xf32>
    %cst_8 = arith.constant -1.000000e+30 : f32
    %14 = vector.broadcast %cst_8 : f32 to vector<2x64xf32>
    %15 = arith.select %7, %13, %14 : vector<2x64xi1>, vector<2x64xf32>
    %c0_9 = arith.constant 0 : index
    %c0_10 = arith.constant 0 : index
    %16 = vector.load %arg6[%c0_9, %c0_10] : memref<2x1xf32, #tpu.memory_space<vmem>>, vector<2x1xf32>
    %cst_11 = arith.constant dense<0xFF800000> : vector<2xf32>
    %17 = vector.multi_reduction <maximumf>, %15, %cst_11 [1] : vector<2x64xf32> to vector<2xf32>
    %18 = vector.shape_cast %17 : vector<2xf32> to vector<2x1xf32>
    %19 = arith.maximumf %16, %18 : vector<2x1xf32>
    %20 = arith.subf %16, %19 : vector<2x1xf32>
    %21 = math.exp %20 : vector<2x1xf32>
    %22 = vector.broadcast %19 : vector<2x1xf32> to vector<2x64xf32>
    %23 = arith.subf %15, %22 : vector<2x64xf32>
    %24 = math.exp %23 : vector<2x64xf32>
    %c0_12 = arith.constant 0 : index
    %c0_13 = arith.constant 0 : index
    %25 = vector.load %arg7[%c0_12, %c0_13] : memref<2x1xf32, #tpu.memory_space<vmem>>, vector<2x1xf32>
    %26 = arith.mulf %21, %25 : vector<2x1xf32>
    %cst_14 = arith.constant dense<0.000000e+00> : vector<2xf32>
    %27 = vector.multi_reduction <add>, %24, %cst_14 [1] : vector<2x64xf32> to vector<2xf32>
    %28 = vector.shape_cast %27 : vector<2xf32> to vector<2x1xf32>
    %29 = arith.addf %26, %28 : vector<2x1xf32>
    %c0_15 = arith.constant 0 : index
    %c0_16 = arith.constant 0 : index
    %30 = vector.load %arg7[%c0_15, %c0_16] : memref<2x1xf32, #tpu.memory_space<vmem>>, vector<2x1xf32>
    tpu.vector_store %arg7[%c0_15, %c0_16], %29 {strides = array<i32>} : memref<2x1xf32, #tpu.memory_space<vmem>>, vector<2x1xf32>,
    %31 = vector.shape_cast %24 : vector<2x64xf32> to vector<2x1x64xf32>
    "tpu.trace_start"() <{level = 10 : i32, message = "bql,blc->bqc"}> : () -> ()
    %cst_17 = arith.constant dense<0.000000e+00> : vector<2x1x32xf32>
    %32 = tpu.matmul %31, %3, %cst_17 {dimension_numbers = #tpu.dot_dimension_numbers<[2], [1], [1], [2], [0, 0, 0, 1, 1, 2], [0], [0]>} : vector<2x1x64xf32>, vector<2x64x32xf32>, vector<2x1x32xf32> -> vector<2x1x32xf32>
    "tpu.trace_stop"() : () -> ()
    %33 = vector.shape_cast %21 : vector<2x1xf32> to vector<2x1x1xf32>
    %c0_18 = arith.constant 0 : index
    %c0_19 = arith.constant 0 : index
    %c0_20 = arith.constant 0 : index
    %34 = vector.load %arg8[%c0_18, %c0_19, %c0_20] : memref<2x1x32xf32, #tpu.memory_space<vmem>>, vector<2x1x32xf32>
    %35 = vector.broadcast %33 : vector<2x1x1xf32> to vector<2x1x32xf32>
    %36 = arith.mulf %35, %34 : vector<2x1x32xf32>
    %37 = arith.addf %36, %32 : vector<2x1x32xf32>
    %c0_21 = arith.constant 0 : index
    %c0_22 = arith.constant 0 : index
    %c0_23 = arith.constant 0 : index
    %38 = vector.load %arg8[%c0_21, %c0_22, %c0_23] : memref<2x1x32xf32, #tpu.memory_space<vmem>>, vector<2x1x32xf32>
    tpu.vector_store %arg8[%c0_21, %c0_22, %c0_23], %37 {strides = array<i32>} : memref<2x1x32xf32, #tpu.memory_space<vmem>>, vector<2x1x32xf32>,
    %c0_24 = arith.constant 0 : index
    %c0_25 = arith.constant 0 : index
    %39 = vector.load %arg6[%c0_24, %c0_25] : memref<2x1xf32, #tpu.memory_space<vmem>>, vector<2x1xf32>
    tpu.vector_store %arg6[%c0_24, %c0_25], %19 {strides = array<i32>} : memref<2x1xf32, #tpu.memory_space<vmem>>, vector<2x1xf32>,
    %c0_i32_26 = arith.constant 0 : i32
    %40 = arith.cmpi eq, %arg1, %c0_i32_26 : i32
    %41 = arith.extui %40 : i1 to i32
    %c0_i32_27 = arith.constant 0 : i32
    %42 = arith.cmpi ne, %41, %c0_i32_27 : i32
    scf.if %42 {
      %c0_28 = arith.constant 0 : index
      %c0_29 = arith.constant 0 : index
      %43 = vector.load %arg7[%c0_28, %c0_29] : memref<2x1xf32, #tpu.memory_space<vmem>>, vector<2x1xf32>
      %44 = tpu.reciprocal %43 : vector<2x1xf32> -> vector<2x1xf32>
      %c0_30 = arith.constant 0 : index
      %c0_31 = arith.constant 0 : index
      %c0_32 = arith.constant 0 : index
      %45 = vector.load %arg8[%c0_30, %c0_31, %c0_32] : memref<2x1x32xf32, #tpu.memory_space<vmem>>, vector<2x1x32xf32>
      %46 = vector.shape_cast %44 : vector<2x1xf32> to vector<2x1x1xf32>
      %47 = vector.broadcast %46 : vector<2x1x1xf32> to vector<2x1x32xf32>
      %48 = arith.mulf %45, %47 : vector<2x1x32xf32>
      %c0_33 = arith.constant 0 : index
      %c0_34 = arith.constant 0 : index
      %49 = vector.load %arg6[%c0_33, %c0_34] : memref<2x1xf32, #tpu.memory_space<vmem>>, vector<2x1xf32>
      %50 = vector.shape_cast %49 : vector<2x1xf32> to vector<2x1x1xf32>
      %cst_35 = arith.constant -5.000000e+29 : f32
      %51 = vector.broadcast %cst_35 : f32 to vector<2x1x1xf32>
      %52 = arith.cmpf ogt, %50, %51 : vector<2x1x1xf32>
      %cst_36 = arith.constant 0x7FC00000 : f32
      %53 = vector.shape_cast %52 : vector<2x1x1xi1> to vector<2x1x1xi1>
      %54 = vector.broadcast %53 : vector<2x1x1xi1> to vector<2x1x32xi1>
      %55 = vector.broadcast %cst_36 : f32 to vector<2x1x32xf32>
      %56 = arith.select %54, %48, %55 : vector<2x1x32xi1>, vector<2x1x32xf32>
      %c0_37 = arith.constant 0 : index
      %c0_38 = arith.constant 0 : index
      %c0_39 = arith.constant 0 : index
      %57 = vector.load %arg5[%c0_37, %c0_38, %c0_39] : memref<2x1x32xf32, #tpu.memory_space<vmem>>, vector<2x1x32xf32>
      tpu.vector_store %arg5[%c0_37, %c0_38, %c0_39], %56 {strides = array<i32>} : memref<2x1x32xf32, #tpu.memory_space<vmem>>, vector<2x1x32xf32>,
    } else {
    }
    return
  }
  func.func @transform_0(%arg0: i32, %arg1: i32) -> (i32, i32, i32) {
    %c0_i32 = arith.constant 0 : i32
    %c0_i32_0 = arith.constant 0 : i32
    return %arg0, %arg1, %c0_i32 : i32, i32, i32
  }
  func.func @transform_1(%arg0: i32, %arg1: i32) -> (i32, i32) {
    %c0_i32 = arith.constant 0 : i32
    %c0_i32_0 = arith.constant 0 : i32
    %c0_i32_1 = arith.constant 0 : i32
    return %c0_i32, %c0_i32_0 : i32, i32
  }
  func.func @transform_2(%arg0: i32, %arg1: i32) -> (i32, i32) {
    %c0_i32 = arith.constant 0 : i32
    return %arg0, %arg1 : i32, i32
  }
  func.func @transform_3(%arg0: i32, %arg1: i32) -> (i32, i32, i32) {
    %c0_i32 = arith.constant 0 : i32
    %c0_i32_0 = arith.constant 0 : i32
    %c0_i32_1 = arith.constant 0 : i32
    return %arg0, %c0_i32, %c0_i32_0 : i32, i32, i32
  }
}

</mosaic_0001>

<llo_original>
// kernel: tpu_custom_call.1
$region0: #{tpu_custom_call.1}
  #allocation0 [shape = 'u32[]', space=smem, size = 0x4, offset = 0x4, fixed_abs, tag = 'smem constant byte address 0x4 - core index']
  #allocation1 [shape = 'u32[144,128]{1,0:T(1,128)}', space=vmem, size = 0x12000, scoped, tag = 'internal scratch']
  #allocation2 [shape = 'f32[2,1]{1,0:T(2,128)}', space=vmem, size = 0x400, scoped, tag = 'scratch operand']
  #allocation3 [shape = 'f32[2,1]{1,0:T(2,128)}', space=vmem, size = 0x400, scoped, tag = 'scratch operand']
  #allocation4 [shape = 'f32[2,1,32]{2,1,0:T(1,128)}', space=vmem, size = 0x400, scoped, tag = 'scratch operand']
  %s0 = inlined_call_operand.vmem [shape: f32[2,64,32], index: 0, kind: input, shape index: {}]
  %s1 = inlined_call_operand.vmem [shape: f32[1,32], index: 1, kind: input, shape index: {}]
  %s2 = inlined_call_operand.vmem [shape: bf16[2,64], index: 2, kind: input, shape index: {}]
  %s3 = inlined_call_operand.hbm [shape: f32[2,1,32], index: 3, kind: output, shape index: {}]
  %s4 = sld [smem:[#allocation0]]
  $region30: #{tpu_custom_call.1} parent=0
    _
  %s6 = ssub.s32 1, %s4
  %s7 = scalar_select 0, %s6, %s4
  $region1: #{tpu_custom_call.1} parent=0
    #allocation5 [shape = 'u8[1024]{0}', space=vmem, size = 0x400, scoped, tag = 'output window, operand 0, single buffered']
    #allocation6 [shape = 's32[1]{0}', space=sflag, size = 0x4, scoped, tag = 'scoped memory for tpu_custom_call.1']
    %8 = vsyncpa [#allocation6], 0
    // Predicated region
    $region2: #{tpu_custom_call.1} parent=1 // pred_check
      _
    $region3: #{tpu_custom_call.1} parent=1 // pred_check_branch
      %10 = sbr.rel (0) target = $region5
    $region4: #{tpu_custom_call.1} parent=1 // pred_region
      _
    $region5: #{tpu_custom_call.1} parent=1 // pred_fallthru
      _
    // Predicated region
    $region6: #{tpu_custom_call.1} parent=1 // pred_check
      _
    $region7: #{tpu_custom_call.1} parent=1 // pred_check_branch
      %12 = sbr.rel (0) target = $region9
    $region8: #{tpu_custom_call.1} parent=1 // pred_region
      _
    $region9: #{tpu_custom_call.1} parent=1 // pred_fallthru
      _
    // Predicated region
    $region10: #{tpu_custom_call.1} parent=1 // pred_check
      _
    $region11: #{tpu_custom_call.1} parent=1 // pred_check_branch
      %14 = sbr.rel (0) target = $region13
    $region12: #{tpu_custom_call.1} parent=1 // pred_region
      _
    $region13: #{tpu_custom_call.1} parent=1 // pred_fallthru
      _
    %p15 = scmp.eq.s32.totalorder 0, 0
    // Predicated region
    $region14: #{tpu_custom_call.1} parent=1 // pred_check
      %p16 = pneg %p15
    $region15: #{tpu_custom_call.1} parent=1 // pred_check_branch
      %18 = sbr.rel (%p16) target = $region17
    $region16: #{tpu_custom_call.1} parent=1 // pred_region
      %vm19 = vcmask 1024
      %20 = vst.msk [vmem:[#allocation2] sm:$0x3] %vm19, -1e+30
      %21 = vst.msk [vmem:[#allocation3] sm:$0x3] %vm19, 0.0
      %vm22 = vcmask 253952
      %23 = vst.msk [vmem:[#allocation4] sm:$0x1] %vm22, 0.0
      %24 = vst.msk [vmem:[#allocation4 + $0x1] sm:$0x1] %vm22, 0.0
    $region17: #{tpu_custom_call.1} parent=1 // pred_fallthru
      _
    %v25 = vld [vmem:[%s0] sm:$0xff]
    %v26 = vld [vmem:[%s0 + $0x8] sm:$0xff]
    %v27 = vld [vmem:[%s0 + $0x10] sm:$0xff]
    %v28 = vld [vmem:[%s0 + $0x18] sm:$0xff]
    %v29 = vld [vmem:[%s0 + $0x20] sm:$0xff]
    %v30 = vld [vmem:[%s0 + $0x28] sm:$0xff]
    %v31 = vld [vmem:[%s0 + $0x30] sm:$0xff]
    %v32 = vld [vmem:[%s0 + $0x38] sm:$0xff]
    %v33 = vld [vmem:[%s0 + $0x40] sm:$0xff]
    %v34 = vld [vmem:[%s0 + $0x48] sm:$0xff]
    %v35 = vld [vmem:[%s0 + $0x50] sm:$0xff]
    %v36 = vld [vmem:[%s0 + $0x58] sm:$0xff]
    %v37 = vld [vmem:[%s0 + $0x60] sm:$0xff]
    %v38 = vld [vmem:[%s0 + $0x68] sm:$0xff]
    %v39 = vld [vmem:[%s0 + $0x70] sm:$0xff]
    %v40 = vld [vmem:[%s0 + $0x78] sm:$0xff]
    %v41 = vld [vmem:[%s2] sm:$0x1]
    %v42 = vunpack.c.l.bf16 %v41
    %vm43 = vcmp.gt.f32.partialorder %v42, 0.0
    %v44 = vld [vmem:[%s1] sm:$0x1]
    %v46 = vlaneseq
    %v47 = vshrl.u32 %v46, 7
    %v48 = vsub.s32 0, %v47
    %v49 = vrot.slane %v44, %v48
    %v51 = vmul.f32 %v25, %v49
    %v52 = vmul.f32 %v26, %v49
    %v53 = vmul.f32 %v27, %v49
    %v54 = vmul.f32 %v28, %v49
    %v55 = vmul.f32 %v29, %v49
    %v56 = vmul.f32 %v30, %v49
    %v57 = vmul.f32 %v31, %v49
    %v58 = vmul.f32 %v32, %v49
    %v59 = vmul.f32 %v33, %v49
    %v60 = vmul.f32 %v34, %v49
    %v61 = vmul.f32 %v35, %v49
    %v62 = vmul.f32 %v36, %v49
    %v63 = vmul.f32 %v37, %v49
    %v64 = vmul.f32 %v38, %v49
    %v65 = vmul.f32 %v39, %v49
    %v66 = vmul.f32 %v40, %v49
    %vm67 = vcmask 261120
    %v68 = vsel %vm67, %v51, 0.0
    %69 = vadd.xlane.f32.xlu0 %v68
    %v70 = vpop.xlane.xlu0 %69
    %v71 = vsel %vm67, %v52, 0.0
    %72 = vadd.xlane.f32.xlu0 %v71
    %v73 = vpop.xlane.xlu0 %72
    %v74 = vsel %vm67, %v53, 0.0
    %75 = vadd.xlane.f32.xlu0 %v74
    %v76 = vpop.xlane.xlu0 %75
    %v77 = vsel %vm67, %v54, 0.0
    %78 = vadd.xlane.f32.xlu0 %v77
    %v79 = vpop.xlane.xlu0 %78
    %v80 = vsel %vm67, %v55, 0.0
    %81 = vadd.xlane.f32.xlu0 %v80
    %v82 = vpop.xlane.xlu0 %81
    %v83 = vsel %vm67, %v56, 0.0
    %84 = vadd.xlane.f32.xlu0 %v83
    %v85 = vpop.xlane.xlu0 %84
    %v86 = vsel %vm67, %v57, 0.0
    %87 = vadd.xlane.f32.xlu0 %v86
    %v88 = vpop.xlane.xlu0 %87
    %v89 = vsel %vm67, %v58, 0.0
    %90 = vadd.xlane.f32.xlu0 %v89
    %v91 = vpop.xlane.xlu0 %90
    %v92 = vsel %vm67, %v59, 0.0
    %93 = vadd.xlane.f32.xlu0 %v92
    %v94 = vpop.xlane.xlu0 %93
    %v95 = vsel %vm67, %v60, 0.0
    %96 = vadd.xlane.f32.xlu0 %v95
    %v97 = vpop.xlane.xlu0 %96
    %v98 = vsel %vm67, %v61, 0.0
    %99 = vadd.xlane.f32.xlu0 %v98
    %v100 = vpop.xlane.xlu0 %99
    %v101 = vsel %vm67, %v62, 0.0
    %102 = vadd.xlane.f32.xlu0 %v101
    %v103 = vpop.xlane.xlu0 %102
    %v104 = vsel %vm67, %v63, 0.0
    %105 = vadd.xlane.f32.xlu0 %v104
    %v106 = vpop.xlane.xlu0 %105
    %v107 = vsel %vm67, %v64, 0.0
    %108 = vadd.xlane.f32.xlu0 %v107
    %v109 = vpop.xlane.xlu0 %108
    %v110 = vsel %vm67, %v65, 0.0
    %111 = vadd.xlane.f32.xlu0 %v110
    %v112 = vpop.xlane.xlu0 %111
    %v113 = vsel %vm67, %v66, 0.0
    %114 = vadd.xlane.f32.xlu0 %v113
    %v115 = vpop.xlane.xlu0 %114
    %v133 = vunpack.c.l.s4 269488144
    %v134 = vunpack.c.0.s8 %v133
    %v135 = vlaneseq
    %v136 = vshrl.u32 %v135, 7
    %v137 = vsub.s32 %v134, %v136
    %v138 = vrot.slane %v70, %v137
    %v140 = vunpack.c.l.s4 842150450
    %v141 = vunpack.c.0.s8 %v140
    %v142 = vlaneseq
    %v143 = vshrl.u32 %v142, 7
    %v144 = vsub.s32 %v141, %v143
    %v145 = vrot.slane %v70, %v144
    %v147 = vunpack.c.l.s4 1414812756
    %v148 = vunpack.c.0.s8 %v147
    %v149 = vlaneseq
    %v150 = vshrl.u32 %v149, 7
    %v151 = vsub.s32 %v148, %v150
    %v152 = vrot.slane %v70, %v151
    %v154 = vunpack.c.l.s4 1987475062
    %v155 = vunpack.c.0.s8 %v154
    %v156 = vlaneseq
    %v157 = vshrl.u32 %v156, 7
    %v158 = vsub.s32 %v155, %v157
    %v159 = vrot.slane %v70, %v158
    %v161 = vunpack.c.l.s4 269488144
    %v162 = vunpack.c.0.s8 %v161
    %v163 = vlaneseq
    %v164 = vshrl.u32 %v163, 7
    %v165 = vsub.s32 %v162, %v164
    %v166 = vrot.slane %v73, %v165
    %v168 = vunpack.c.l.s4 842150450
    %v169 = vunpack.c.0.s8 %v168
    %v170 = vlaneseq
    %v171 = vshrl.u32 %v170, 7
    %v172 = vsub.s32 %v169, %v171
    %v173 = vrot.slane %v73, %v172
    %v175 = vunpack.c.l.s4 1414812756
    %v176 = vunpack.c.0.s8 %v175
    %v177 = vlaneseq
    %v178 = vshrl.u32 %v177, 7
    %v179 = vsub.s32 %v176, %v178
    %v180 = vrot.slane %v73, %v179
    %v182 = vunpack.c.l.s4 1987475062
    %v183 = vunpack.c.0.s8 %v182
    %v184 = vlaneseq
    %v185 = vshrl.u32 %v184, 7
    %v186 = vsub.s32 %v183, %v185
    %v187 = vrot.slane %v73, %v186
    %v189 = vunpack.c.l.s4 269488144
    %v190 = vunpack.c.0.s8 %v189
    %v191 = vlaneseq
    %v192 = vshrl.u32 %v191, 7
    %v193 = vsub.s32 %v190, %v192
    %v194 = vrot.slane %v76, %v193
    %v196 = vunpack.c.l.s4 842150450
    %v197 = vunpack.c.0.s8 %v196
    %v198 = vlaneseq
    %v199 = vshrl.u32 %v198, 7
    %v200 = vsub.s32 %v197, %v199
    %v201 = vrot.slane %v76, %v200
    %v203 = vunpack.c.l.s4 1414812756
    %v204 = vunpack.c.0.s8 %v203
    %v205 = vlaneseq
    %v206 = vshrl.u32 %v205, 7
    %v207 = vsub.s32 %v204, %v206
    %v208 = vrot.slane %v76, %v207
    %v210 = vunpack.c.l.s4 1987475062
    %v211 = vunpack.c.0.s8 %v210
    %v212 = vlaneseq
    %v213 = vshrl.u32 %v212, 7
    %v214 = vsub.s32 %v211, %v213
    %v215 = vrot.slane %v76, %v214
    %v217 = vunpack.c.l.s4 269488144
    %v218 = vunpack.c.0.s8 %v217
    %v219 = vlaneseq
    %v220 = vshrl.u32 %v219, 7
    %v221 = vsub.s32 %v218, %v220
    %v222 = vrot.slane %v79, %v221
    %v224 = vunpack.c.l.s4 842150450
    %v225 = vunpack.c.0.s8 %v224
    %v226 = vlaneseq
    %v227 = vshrl.u32 %v226, 7
    %v228 = vsub.s32 %v225, %v227
    %v229 = vrot.slane %v79, %v228
    %v231 = vunpack.c.l.s4 1414812756
    %v232 = vunpack.c.0.s8 %v231
    %v233 = vlaneseq
    %v234 = vshrl.u32 %v233, 7
    %v235 = vsub.s32 %v232, %v234
    %v236 = vrot.slane %v79, %v235
    %v238 = vunpack.c.l.s4 1987475062
    %v239 = vunpack.c.0.s8 %v238
    %v240 = vlaneseq
    %v241 = vshrl.u32 %v240, 7
    %v242 = vsub.s32 %v239, %v241
    %v243 = vrot.slane %v79, %v242
    %v245 = vunpack.c.l.s4 269488144
    %v246 = vunpack.c.0.s8 %v245
    %v247 = vlaneseq
    %v248 = vshrl.u32 %v247, 7
    %v249 = vsub.s32 %v246, %v248
    %v250 = vrot.slane %v82, %v249
    %v252 = vunpack.c.l.s4 842150450
    %v253 = vunpack.c.0.s8 %v252
    %v254 = vlaneseq
    %v255 = vshrl.u32 %v254, 7
    %v256 = vsub.s32 %v253, %v255
    %v257 = vrot.slane %v82, %v256
    %v259 = vunpack.c.l.s4 1414812756
    %v260 = vunpack.c.0.s8 %v259
    %v261 = vlaneseq
    %v262 = vshrl.u32 %v261, 7
    %v263 = vsub.s32 %v260, %v262
    %v264 = vrot.slane %v82, %v263
    %v266 = vunpack.c.l.s4 1987475062
    %v267 = vunpack.c.0.s8 %v266
    %v268 = vlaneseq
    %v269 = vshrl.u32 %v268, 7
    %v270 = vsub.s32 %v267, %v269
    %v271 = vrot.slane %v82, %v270
    %v273 = vunpack.c.l.s4 269488144
    %v274 = vunpack.c.0.s8 %v273
    %v275 = vlaneseq
    %v276 = vshrl.u32 %v275, 7
    %v277 = vsub.s32 %v274, %v276
    %v278 = vrot.slane %v85, %v277
    %v280 = vunpack.c.l.s4 842150450
    %v281 = vunpack.c.0.s8 %v280
    %v282 = vlaneseq
    %v283 = vshrl.u32 %v282, 7
    %v284 = vsub.s32 %v281, %v283
    %v285 = vrot.slane %v85, %v284
    %v287 = vunpack.c.l.s4 1414812756
    %v288 = vunpack.c.0.s8 %v287
    %v289 = vlaneseq
    %v290 = vshrl.u32 %v289, 7
    %v291 = vsub.s32 %v288, %v290
    %v292 = vrot.slane %v85, %v291
    %v294 = vunpack.c.l.s4 1987475062
    %v295 = vunpack.c.0.s8 %v294
    %v296 = vlaneseq
    %v297 = vshrl.u32 %v296, 7
    %v298 = vsub.s32 %v295, %v297
    %v299 = vrot.slane %v85, %v298
    %v301 = vunpack.c.l.s4 269488144
    %v302 = vunpack.c.0.s8 %v301
    %v303 = vlaneseq
    %v304 = vshrl.u32 %v303, 7
    %v305 = vsub.s32 %v302, %v304
    %v306 = vrot.slane %v88, %v305
    %v308 = vunpack.c.l.s4 842150450
    %v309 = vunpack.c.0.s8 %v308
    %v310 = vlaneseq
    %v311 = vshrl.u32 %v310, 7
    %v312 = vsub.s32 %v309, %v311
    %v313 = vrot.slane %v88, %v312
    %v315 = vunpack.c.l.s4 1414812756
    %v316 = vunpack.c.0.s8 %v315
    %v317 = vlaneseq
    %v318 = vshrl.u32 %v317, 7
    %v319 = vsub.s32 %v316, %v318
    %v320 = vrot.slane %v88, %v319
    %v322 = vunpack.c.l.s4 1987475062
    %v323 = vunpack.c.0.s8 %v322
    %v324 = vlaneseq
    %v325 = vshrl.u32 %v324, 7
    %v326 = vsub.s32 %v323, %v325
    %v327 = vrot.slane %v88, %v326
    %v329 = vunpack.c.l.s4 269488144
    %v330 = vunpack.c.0.s8 %v329
    %v331 = vlaneseq
    %v332 = vshrl.u32 %v331, 7
    %v333 = vsub.s32 %v330, %v332
    %v334 = vrot.slane %v91, %v333
    %v336 = vunpack.c.l.s4 842150450
    %v337 = vunpack.c.0.s8 %v336
    %v338 = vlaneseq
    %v339 = vshrl.u32 %v338, 7
    %v340 = vsub.s32 %v337, %v339
    %v341 = vrot.slane %v91, %v340
    %v343 = vunpack.c.l.s4 1414812756
    %v344 = vunpack.c.0.s8 %v343
    %v345 = vlaneseq
    %v346 = vshrl.u32 %v345, 7
    %v347 = vsub.s32 %v344, %v346
    %v348 = vrot.slane %v91, %v347
    %v350 = vunpack.c.l.s4 1987475062
    %v351 = vunpack.c.0.s8 %v350
    %v352 = vlaneseq
    %v353 = vshrl.u32 %v352, 7
    %v354 = vsub.s32 %v351, %v353
    %v355 = vrot.slane %v91, %v354
    %v357 = vunpack.c.l.s4 269488144
    %v358 = vunpack.c.0.s8 %v357
    %v359 = vlaneseq
    %v360 = vshrl.u32 %v359, 7
    %v361 = vsub.s32 %v358, %v360
    %v362 = vrot.slane %v94, %v361
    %v364 = vunpack.c.l.s4 842150450
    %v365 = vunpack.c.0.s8 %v364
    %v366 = vlaneseq
    %v367 = vshrl.u32 %v366, 7
    %v368 = vsub.s32 %v365, %v367
    %v369 = vrot.slane %v94, %v368
    %v371 = vunpack.c.l.s4 1414812756
    %v372 = vunpack.c.0.s8 %v371
    %v373 = vlaneseq
    %v374 = vshrl.u32 %v373, 7
    %v375 = vsub.s32 %v372, %v374
    %v376 = vrot.slane %v94, %v375
    %v378 = vunpack.c.l.s4 1987475062
    %v379 = vunpack.c.0.s8 %v378
    %v380 = vlaneseq
    %v381 = vshrl.u32 %v380, 7
    %v382 = vsub.s32 %v379, %v381
    %v383 = vrot.slane %v94, %v382
    %v385 = vunpack.c.l.s4 269488144
    %v386 = vunpack.c.0.s8 %v385
    %v387 = vlaneseq
    %v388 = vshrl.u32 %v387, 7
    %v389 = vsub.s32 %v386, %v388
    %v390 = vrot.slane %v97, %v389
    %v392 = vunpack.c.l.s4 842150450
    %v393 = vunpack.c.0.s8 %v392
    %v394 = vlaneseq
    %v395 = vshrl.u32 %v394, 7
    %v396 = vsub.s32 %v393, %v395
    %v397 = vrot.slane %v97, %v396
    %v399 = vunpack.c.l.s4 1414812756
    %v400 = vunpack.c.0.s8 %v399
    %v401 = vlaneseq
    %v402 = vshrl.u32 %v401, 7
    %v403 = vsub.s32 %v400, %v402
    %v404 = vrot.slane %v97, %v403
    %v406 = vunpack.c.l.s4 1987475062
    %v407 = vunpack.c.0.s8 %v406
    %v408 = vlaneseq
    %v409 = vshrl.u32 %v408, 7
    %v410 = vsub.s32 %v407, %v409
    %v411 = vrot.slane %v97, %v410
    %v413 = vunpack.c.l.s4 269488144
    %v414 = vunpack.c.0.s8 %v413
    %v415 = vlaneseq
    %v416 = vshrl.u32 %v415, 7
    %v417 = vsub.s32 %v414, %v416
    %v418 = vrot.slane %v100, %v417
    %v420 = vunpack.c.l.s4 842150450
    %v421 = vunpack.c.0.s8 %v420
    %v422 = vlaneseq
    %v423 = vshrl.u32 %v422, 7
    %v424 = vsub.s32 %v421, %v423
    %v425 = vrot.slane %v100, %v424
    %v427 = vunpack.c.l.s4 1414812756
    %v428 = vunpack.c.0.s8 %v427
    %v429 = vlaneseq
    %v430 = vshrl.u32 %v429, 7
    %v431 = vsub.s32 %v428, %v430
    %v432 = vrot.slane %v100, %v431
    %v434 = vunpack.c.l.s4 1987475062
    %v435 = vunpack.c.0.s8 %v434
    %v436 = vlaneseq
    %v437 = vshrl.u32 %v436, 7
    %v438 = vsub.s32 %v435, %v437
    %v439 = vrot.slane %v100, %v438
    %v441 = vunpack.c.l.s4 269488144
    %v442 = vunpack.c.0.s8 %v441
    %v443 = vlaneseq
    %v444 = vshrl.u32 %v443, 7
    %v445 = vsub.s32 %v442, %v444
    %v446 = vrot.slane %v103, %v445
    %v448 = vunpack.c.l.s4 842150450
    %v449 = vunpack.c.0.s8 %v448
    %v450 = vlaneseq
    %v451 = vshrl.u32 %v450, 7
    %v452 = vsub.s32 %v449, %v451
    %v453 = vrot.slane %v103, %v452
    %v455 = vunpack.c.l.s4 1414812756
    %v456 = vunpack.c.0.s8 %v455
    %v457 = vlaneseq
    %v458 = vshrl.u32 %v457, 7
    %v459 = vsub.s32 %v456, %v458
    %v460 = vrot.slane %v103, %v459
    %v462 = vunpack.c.l.s4 1987475062
    %v463 = vunpack.c.0.s8 %v462
    %v464 = vlaneseq
    %v465 = vshrl.u32 %v464, 7
    %v466 = vsub.s32 %v463, %v465
    %v467 = vrot.slane %v103, %v466
    %v469 = vunpack.c.l.s4 269488144
    %v470 = vunpack.c.0.s8 %v469
    %v471 = vlaneseq
    %v472 = vshrl.u32 %v471, 7
    %v473 = vsub.s32 %v470, %v472
    %v474 = vrot.slane %v106, %v473
    %v476 = vunpack.c.l.s4 842150450
    %v477 = vunpack.c.0.s8 %v476
    %v478 = vlaneseq
    %v479 = vshrl.u32 %v478, 7
    %v480 = vsub.s32 %v477, %v479
    %v481 = vrot.slane %v106, %v480
    %v483 = vunpack.c.l.s4 1414812756
    %v484 = vunpack.c.0.s8 %v483
    %v485 = vlaneseq
    %v486 = vshrl.u32 %v485, 7
    %v487 = vsub.s32 %v484, %v486
    %v488 = vrot.slane %v106, %v487
    %v490 = vunpack.c.l.s4 1987475062
    %v491 = vunpack.c.0.s8 %v490
    %v492 = vlaneseq
    %v493 = vshrl.u32 %v492, 7
    %v494 = vsub.s32 %v491, %v493
    %v495 = vrot.slane %v106, %v494
    %v497 = vunpack.c.l.s4 269488144
    %v498 = vunpack.c.0.s8 %v497
    %v499 = vlaneseq
    %v500 = vshrl.u32 %v499, 7
    %v501 = vsub.s32 %v498, %v500
    %v502 = vrot.slane %v109, %v501
    %v504 = vunpack.c.l.s4 842150450
    %v505 = vunpack.c.0.s8 %v504
    %v506 = vlaneseq
    %v507 = vshrl.u32 %v506, 7
    %v508 = vsub.s32 %v505, %v507
    %v509 = vrot.slane %v109, %v508
    %v511 = vunpack.c.l.s4 1414812756
    %v512 = vunpack.c.0.s8 %v511
    %v513 = vlaneseq
    %v514 = vshrl.u32 %v513, 7
    %v515 = vsub.s32 %v512, %v514
    %v516 = vrot.slane %v109, %v515
    %v518 = vunpack.c.l.s4 1987475062
    %v519 = vunpack.c.0.s8 %v518
    %v520 = vlaneseq
    %v521 = vshrl.u32 %v520, 7
    %v522 = vsub.s32 %v519, %v521
    %v523 = vrot.slane %v109, %v522
    %v525 = vunpack.c.l.s4 269488144
    %v526 = vunpack.c.0.s8 %v525
    %v527 = vlaneseq
    %v528 = vshrl.u32 %v527, 7
    %v529 = vsub.s32 %v526, %v528
    %v530 = vrot.slane %v112, %v529
    %v532 = vunpack.c.l.s4 842150450
    %v533 = vunpack.c.0.s8 %v532
    %v534 = vlaneseq
    %v535 = vshrl.u32 %v534, 7
    %v536 = vsub.s32 %v533, %v535
    %v537 = vrot.slane %v112, %v536
    %v539 = vunpack.c.l.s4 1414812756
    %v540 = vunpack.c.0.s8 %v539
    %v541 = vlaneseq
    %v542 = vshrl.u32 %v541, 7
    %v543 = vsub.s32 %v540, %v542
    %v544 = vrot.slane %v112, %v543
    %v546 = vunpack.c.l.s4 1987475062
    %v547 = vunpack.c.0.s8 %v546
    %v548 = vlaneseq
    %v549 = vshrl.u32 %v548, 7
    %v550 = vsub.s32 %v547, %v549
    %v551 = vrot.slane %v112, %v550
    %v553 = vunpack.c.l.s4 269488144
    %v554 = vunpack.c.0.s8 %v553
    %v555 = vlaneseq
    %v556 = vshrl.u32 %v555, 7
    %v557 = vsub.s32 %v554, %v556
    %v558 = vrot.slane %v115, %v557
    %v560 = vunpack.c.l.s4 842150450
    %v561 = vunpack.c.0.s8 %v560
    %v562 = vlaneseq
    %v563 = vshrl.u32 %v562, 7
    %v564 = vsub.s32 %v561, %v563
    %v565 = vrot.slane %v115, %v564
    %v567 = vunpack.c.l.s4 1414812756
    %v568 = vunpack.c.0.s8 %v567
    %v569 = vlaneseq
    %v570 = vshrl.u32 %v569, 7
    %v571 = vsub.s32 %v568, %v570
    %v572 = vrot.slane %v115, %v571
    %v574 = vunpack.c.l.s4 1987475062
    %v575 = vunpack.c.0.s8 %v574
    %v576 = vlaneseq
    %v577 = vshrl.u32 %v576, 7
    %v578 = vsub.s32 %v575, %v577
    %v579 = vrot.slane %v115, %v578
    %v580 = vcombine.low %v138, %v145
    %v581 = vcombine.low %v152, %v159
    %v583 = vunpack.c.l.s4 1983009808
    %v584 = vunpack.c.0.s8 %v583
    %v585 = vlaneseq
    %v586 = vshrl.u32 %v585, 7
    %v587 = vsub.s32 %v584, %v586
    %v588 = vrot.slane %v580, %v587
    %v590 = vunpack.c.l.s4 1983009808
    %v591 = vunpack.c.0.s8 %v590
    %v592 = vlaneseq
    %v593 = vshrl.u32 %v592, 7
    %v594 = vsub.s32 %v591, %v593
    %v595 = vrot.slane %v581, %v594
    %v596 = vcombine.low %v588, %v595
    %v597 = vcombine.low %v166, %v173
    %v598 = vcombine.low %v180, %v187
    %v600 = vunpack.c.l.s4 1983009808
    %v601 = vunpack.c.0.s8 %v600
    %v602 = vlaneseq
    %v603 = vshrl.u32 %v602, 7
    %v604 = vsub.s32 %v601, %v603
    %v605 = vrot.slane %v597, %v604
    %v607 = vunpack.c.l.s4 1983009808
    %v608 = vunpack.c.0.s8 %v607
    %v609 = vlaneseq
    %v610 = vshrl.u32 %v609, 7
    %v611 = vsub.s32 %v608, %v610
    %v612 = vrot.slane %v598, %v611
    %v613 = vcombine.low %v605, %v612
    %v614 = vcombine.low %v194, %v201
    %v615 = vcombine.low %v208, %v215
    %v617 = vunpack.c.l.s4 1983009808
    %v618 = vunpack.c.0.s8 %v617
    %v619 = vlaneseq
    %v620 = vshrl.u32 %v619, 7
    %v621 = vsub.s32 %v618, %v620
    %v622 = vrot.slane %v614, %v621
    %v624 = vunpack.c.l.s4 1983009808
    %v625 = vunpack.c.0.s8 %v624
    %v626 = vlaneseq
    %v627 = vshrl.u32 %v626, 7
    %v628 = vsub.s32 %v625, %v627
    %v629 = vrot.slane %v615, %v628
    %v630 = vcombine.low %v622, %v629
    %v631 = vcombine.low %v222, %v229
    %v632 = vcombine.low %v236, %v243
    %v634 = vunpack.c.l.s4 1983009808
    %v635 = vunpack.c.0.s8 %v634
    %v636 = vlaneseq
    %v637 = vshrl.u32 %v636, 7
    %v638 = vsub.s32 %v635, %v637
    %v639 = vrot.slane %v631, %v638
    %v641 = vunpack.c.l.s4 1983009808
    %v642 = vunpack.c.0.s8 %v641
    %v643 = vlaneseq
    %v644 = vshrl.u32 %v643, 7
    %v645 = vsub.s32 %v642, %v644
    %v646 = vrot.slane %v632, %v645
    %v647 = vcombine.low %v639, %v646
    %v648 = vcombine.low %v250, %v257
    %v649 = vcombine.low %v264, %v271
    %v651 = vunpack.c.l.s4 1983009808
    %v652 = vunpack.c.0.s8 %v651
    %v653 = vlaneseq
    %v654 = vshrl.u32 %v653, 7
    %v655 = vsub.s32 %v652, %v654
    %v656 = vrot.slane %v648, %v655
    %v658 = vunpack.c.l.s4 1983009808
    %v659 = vunpack.c.0.s8 %v658
    %v660 = vlaneseq
    %v661 = vshrl.u32 %v660, 7
    %v662 = vsub.s32 %v659, %v661
    %v663 = vrot.slane %v649, %v662
    %v664 = vcombine.low %v656, %v663
    %v665 = vcombine.low %v278, %v285
    %v666 = vcombine.low %v292, %v299
    %v668 = vunpack.c.l.s4 1983009808
    %v669 = vunpack.c.0.s8 %v668
    %v670 = vlaneseq
    %v671 = vshrl.u32 %v670, 7
    %v672 = vsub.s32 %v669, %v671
    %v673 = vrot.slane %v665, %v672
    %v675 = vunpack.c.l.s4 1983009808
    %v676 = vunpack.c.0.s8 %v675
    %v677 = vlaneseq
    %v678 = vshrl.u32 %v677, 7
    %v679 = vsub.s32 %v676, %v678
    %v680 = vrot.slane %v666, %v679
    %v681 = vcombine.low %v673, %v680
    %v682 = vcombine.low %v306, %v313
    %v683 = vcombine.low %v320, %v327
    %v685 = vunpack.c.l.s4 1983009808
    %v686 = vunpack.c.0.s8 %v685
    %v687 = vlaneseq
    %v688 = vshrl.u32 %v687, 7
    %v689 = vsub.s32 %v686, %v688
    %v690 = vrot.slane %v682, %v689
    %v692 = vunpack.c.l.s4 1983009808
    %v693 = vunpack.c.0.s8 %v692
    %v694 = vlaneseq
    %v695 = vshrl.u32 %v694, 7
    %v696 = vsub.s32 %v693, %v695
    %v697 = vrot.slane %v683, %v696
    %v698 = vcombine.low %v690, %v697
    %v699 = vcombine.low %v334, %v341
    %v700 = vcombine.low %v348, %v355
    %v702 = vunpack.c.l.s4 1983009808
    %v703 = vunpack.c.0.s8 %v702
    %v704 = vlaneseq
    %v705 = vshrl.u32 %v704, 7
    %v706 = vsub.s32 %v703, %v705
    %v707 = vrot.slane %v699, %v706
    %v709 = vunpack.c.l.s4 1983009808
    %v710 = vunpack.c.0.s8 %v709
    %v711 = vlaneseq
    %v712 = vshrl.u32 %v711, 7
    %v713 = vsub.s32 %v710, %v712
    %v714 = vrot.slane %v700, %v713
    %v715 = vcombine.low %v707, %v714
    %v716 = vcombine.low %v362, %v369
    %v717 = vcombine.low %v376, %v383
    %v719 = vunpack.c.l.s4 1983009808
    %v720 = vunpack.c.0.s8 %v719
    %v721 = vlaneseq
    %v722 = vshrl.u32 %v721, 7
    %v723 = vsub.s32 %v720, %v722
    %v724 = vrot.slane %v716, %v723
    %v726 = vunpack.c.l.s4 1983009808
    %v727 = vunpack.c.0.s8 %v726
    %v728 = vlaneseq
    %v729 = vshrl.u32 %v728, 7
    %v730 = vsub.s32 %v727, %v729
    %v731 = vrot.slane %v717, %v730
    %v732 = vcombine.low %v724, %v731
    %v733 = vcombine.low %v390, %v397
    %v734 = vcombine.low %v404, %v411
    %v736 = vunpack.c.l.s4 1983009808
    %v737 = vunpack.c.0.s8 %v736
    %v738 = vlaneseq
    %v739 = vshrl.u32 %v738, 7
    %v740 = vsub.s32 %v737, %v739
    %v741 = vrot.slane %v733, %v740
    %v743 = vunpack.c.l.s4 1983009808
    %v744 = vunpack.c.0.s8 %v743
    %v745 = vlaneseq
    %v746 = vshrl.u32 %v745, 7
    %v747 = vsub.s32 %v744, %v746
    %v748 = vrot.slane %v734, %v747
    %v749 = vcombine.low %v741, %v748
    %v750 = vcombine.low %v418, %v425
    %v751 = vcombine.low %v432, %v439
    %v753 = vunpack.c.l.s4 1983009808
    %v754 = vunpack.c.0.s8 %v753
    %v755 = vlaneseq
    %v756 = vshrl.u32 %v755, 7
    %v757 = vsub.s32 %v754, %v756
    %v758 = vrot.slane %v750, %v757
    %v760 = vunpack.c.l.s4 1983009808
    %v761 = vunpack.c.0.s8 %v760
    %v762 = vlaneseq
    %v763 = vshrl.u32 %v762, 7
    %v764 = vsub.s32 %v761, %v763
    %v765 = vrot.slane %v751, %v764
    %v766 = vcombine.low %v758, %v765
    %v767 = vcombine.low %v446, %v453
    %v768 = vcombine.low %v460, %v467
    %v770 = vunpack.c.l.s4 1983009808
    %v771 = vunpack.c.0.s8 %v770
    %v772 = vlaneseq
    %v773 = vshrl.u32 %v772, 7
    %v774 = vsub.s32 %v771, %v773
    %v775 = vrot.slane %v767, %v774
    %v777 = vunpack.c.l.s4 1983009808
    %v778 = vunpack.c.0.s8 %v777
    %v779 = vlaneseq
    %v780 = vshrl.u32 %v779, 7
    %v781 = vsub.s32 %v778, %v780
    %v782 = vrot.slane %v768, %v781
    %v783 = vcombine.low %v775, %v782
    %v784 = vcombine.low %v474, %v481
    %v785 = vcombine.low %v488, %v495
    %v787 = vunpack.c.l.s4 1983009808
    %v788 = vunpack.c.0.s8 %v787
    %v789 = vlaneseq
    %v790 = vshrl.u32 %v789, 7
    %v791 = vsub.s32 %v788, %v790
    %v792 = vrot.slane %v784, %v791
    %v794 = vunpack.c.l.s4 1983009808
    %v795 = vunpack.c.0.s8 %v794
    %v796 = vlaneseq
    %v797 = vshrl.u32 %v796, 7
    %v798 = vsub.s32 %v795, %v797
    %v799 = vrot.slane %v785, %v798
    %v800 = vcombine.low %v792, %v799
    %v801 = vcombine.low %v502, %v509
    %v802 = vcombine.low %v516, %v523
    %v804 = vunpack.c.l.s4 1983009808
    %v805 = vunpack.c.0.s8 %v804
    %v806 = vlaneseq
    %v807 = vshrl.u32 %v806, 7
    %v808 = vsub.s32 %v805, %v807
    %v809 = vrot.slane %v801, %v808
    %v811 = vunpack.c.l.s4 1983009808
    %v812 = vunpack.c.0.s8 %v811
    %v813 = vlaneseq
    %v814 = vshrl.u32 %v813, 7
    %v815 = vsub.s32 %v812, %v814
    %v816 = vrot.slane %v802, %v815
    %v817 = vcombine.low %v809, %v816
    %v818 = vcombine.low %v530, %v537
    %v819 = vcombine.low %v544, %v551
    %v821 = vunpack.c.l.s4 1983009808
    %v822 = vunpack.c.0.s8 %v821
    %v823 = vlaneseq
    %v824 = vshrl.u32 %v823, 7
    %v825 = vsub.s32 %v822, %v824
    %v826 = vrot.slane %v818, %v825
    %v828 = vunpack.c.l.s4 1983009808
    %v829 = vunpack.c.0.s8 %v828
    %v830 = vlaneseq
    %v831 = vshrl.u32 %v830, 7
    %v832 = vsub.s32 %v829, %v831
    %v833 = vrot.slane %v819, %v832
    %v834 = vcombine.low %v826, %v833
    %v835 = vcombine.low %v558, %v565
    %v836 = vcombine.low %v572, %v579
    %v838 = vunpack.c.l.s4 1983009808
    %v839 = vunpack.c.0.s8 %v838
    %v840 = vlaneseq
    %v841 = vshrl.u32 %v840, 7
    %v842 = vsub.s32 %v839, %v841
    %v843 = vrot.slane %v835, %v842
    %v845 = vunpack.c.l.s4 1983009808
    %v846 = vunpack.c.0.s8 %v845
    %v847 = vlaneseq
    %v848 = vshrl.u32 %v847, 7
    %v849 = vsub.s32 %v846, %v848
    %v850 = vrot.slane %v836, %v849
    %v851 = vcombine.low %v843, %v850
    %852 = vset.pattern.permute.xlu0 0
    %853 = vperm.xlu0 %852, %v596
    %v854 = vpop.permute.xlu0 %853
    %855 = vset.pattern.permute.xlu0 0
    %856 = vperm.xlu0 %855, %v613
    %v857 = vpop.permute.xlu0 %856
    %858 = vset.pattern.permute.xlu0 0
    %859 = vperm.xlu0 %858, %v630
    %v860 = vpop.permute.xlu0 %859
    %861 = vset.pattern.permute.xlu0 0
    %862 = vperm.xlu0 %861, %v647
    %v863 = vpop.permute.xlu0 %862
    %864 = vset.pattern.permute.xlu0 0
    %865 = vperm.xlu0 %864, %v664
    %v866 = vpop.permute.xlu0 %865
    %867 = vset.pattern.permute.xlu0 0
    %868 = vperm.xlu0 %867, %v681
    %v869 = vpop.permute.xlu0 %868
    %870 = vset.pattern.permute.xlu0 0
    %871 = vperm.xlu0 %870, %v698
    %v872 = vpop.permute.xlu0 %871
    %873 = vset.pattern.permute.xlu0 0
    %874 = vperm.xlu0 %873, %v715
    %v875 = vpop.permute.xlu0 %874
    %876 = vset.pattern.permute.xlu0 0
    %877 = vperm.xlu0 %876, %v732
    %v878 = vpop.permute.xlu0 %877
    %879 = vset.pattern.permute.xlu0 0
    %880 = vperm.xlu0 %879, %v749
    %v881 = vpop.permute.xlu0 %880
    %882 = vset.pattern.permute.xlu0 0
    %883 = vperm.xlu0 %882, %v766
    %v884 = vpop.permute.xlu0 %883
    %885 = vset.pattern.permute.xlu0 0
    %886 = vperm.xlu0 %885, %v783
    %v887 = vpop.permute.xlu0 %886
    %888 = vset.pattern.permute.xlu0 0
    %889 = vperm.xlu0 %888, %v800
    %v890 = vpop.permute.xlu0 %889
    %891 = vset.pattern.permute.xlu0 0
    %892 = vperm.xlu0 %891, %v817
    %v893 = vpop.permute.xlu0 %892
    %894 = vset.pattern.permute.xlu0 0
    %895 = vperm.xlu0 %894, %v834
    %v896 = vpop.permute.xlu0 %895
    %897 = vset.pattern.permute.xlu0 0
    %898 = vperm.xlu0 %897, %v851
    %v899 = vpop.permute.xlu0 %898
    %v900 = vlaneseq
    %v901 = vand.u32 %v900, 127
    %v902 = vlaneseq
    %v903 = vshrl.u32 %v902, 7
    %v904 = vsub.s32 %v901, %v903
    %v905 = vrot.slane %v854, %v904
    %v906 = vadd.s32 %v901, 4294967288
    %v907 = vlaneseq
    %v908 = vshrl.u32 %v907, 7
    %v909 = vsub.s32 %v906, %v908
    %v910 = vrot.slane %v857, %v909
    %vm911 = vcmask 130112
    %v912 = vsel %vm911, %v910, %v905
    %v913 = vadd.s32 %v901, 4294967280
    %v914 = vlaneseq
    %v915 = vshrl.u32 %v914, 7
    %v916 = vsub.s32 %v913, %v915
    %v917 = vrot.slane %v860, %v916
    %vm918 = vcmask 195712
    %v919 = vsel %vm918, %v917, %v912
    %v920 = vadd.s32 %v901, 4294967272
    %v921 = vlaneseq
    %v922 = vshrl.u32 %v921, 7
    %v923 = vsub.s32 %v920, %v922
    %v924 = vrot.slane %v863, %v923
    %vm925 = vcmask 261312
    %v926 = vsel %vm925, %v924, %v919
    %v927 = vadd.s32 %v901, 4294967264
    %v928 = vlaneseq
    %v929 = vshrl.u32 %v928, 7
    %v930 = vsub.s32 %v927, %v929
    %v931 = vrot.slane %v866, %v930
    %vm932 = vcmask 326912
    %v933 = vsel %vm932, %v931, %v926
    %v934 = vadd.s32 %v901, 4294967256
    %v935 = vlaneseq
    %v936 = vshrl.u32 %v935, 7
    %v937 = vsub.s32 %v934, %v936
    %v938 = vrot.slane %v869, %v937
    %vm939 = vcmask 392512
    %v940 = vsel %vm939, %v938, %v933
    %v941 = vadd.s32 %v901, 4294967248
    %v942 = vlaneseq
    %v943 = vshrl.u32 %v942, 7
    %v944 = vsub.s32 %v941, %v943
    %v945 = vrot.slane %v872, %v944
    %vm946 = vcmask 458112
    %v947 = vsel %vm946, %v945, %v940
    %v948 = vadd.s32 %v901, 4294967240
    %v949 = vlaneseq
    %v950 = vshrl.u32 %v949, 7
    %v951 = vsub.s32 %v948, %v950
    %v952 = vrot.slane %v875, %v951
    %vm953 = vcmask 523712
    %v954 = vsel %vm953, %v952, %v947
    %v955 = vlaneseq
    %v956 = vshrl.u32 %v955, 7
    %v957 = vsub.s32 %v901, %v956
    %v958 = vrot.slane %v878, %v957
    %v959 = vlaneseq
    %v960 = vshrl.u32 %v959, 7
    %v961 = vsub.s32 %v906, %v960
    %v962 = vrot.slane %v881, %v961
    %v963 = vsel %vm911, %v962, %v958
    %v964 = vlaneseq
    %v965 = vshrl.u32 %v964, 7
    %v966 = vsub.s32 %v913, %v965
    %v967 = vrot.slane %v884, %v966
    %v968 = vsel %vm918, %v967, %v963
    %v969 = vlaneseq
    %v970 = vshrl.u32 %v969, 7
    %v971 = vsub.s32 %v920, %v970
    %v972 = vrot.slane %v887, %v971
    %v973 = vsel %vm925, %v972, %v968
    %v974 = vlaneseq
    %v975 = vshrl.u32 %v974, 7
    %v976 = vsub.s32 %v927, %v975
    %v977 = vrot.slane %v890, %v976
    %v978 = vsel %vm932, %v977, %v973
    %v979 = vlaneseq
    %v980 = vshrl.u32 %v979, 7
    %v981 = vsub.s32 %v934, %v980
    %v982 = vrot.slane %v893, %v981
    %v983 = vsel %vm939, %v982, %v978
    %v984 = vlaneseq
    %v985 = vshrl.u32 %v984, 7
    %v986 = vsub.s32 %v941, %v985
    %v987 = vrot.slane %v896, %v986
    %v988 = vsel %vm946, %v987, %v983
    %v989 = vlaneseq
    %v990 = vshrl.u32 %v989, 7
    %v991 = vsub.s32 %v948, %v990
    %v992 = vrot.slane %v899, %v991
    %v993 = vsel %vm953, %v992, %v988
    %vm994 = vcmask 1041409
    %v995 = vsel %vm994, %v993, %v954
    %v997 = vunpack.c.l.s4 1983009808
    %v998 = vunpack.c.0.s8 %v997
    %v999 = vlaneseq
    %v1000 = vshrl.u32 %v999, 7
    %v1001 = vsub.s32 %v998, %v1000
    %v1002 = vrot.slane %v995, %v1001
    %v1004 = vsel %vm43, %v1002, -1e+30
    %v1005 = vld [vmem:[#allocation2] sm:$0x3]
    %vm1006 = vcmask 517120
    %v1007 = vsel %vm1006, %v1004, -inf
    %1008 = vmax.xlane.f32.xlu0 %v1007
    %v1009 = vpop.xlane.xlu0 %1008
    %v1010 = vmax.f32 %v1005, %v1009
    %v1011 = vsub.f32 %v1005, %v1010
    %v1012 = vmul.f32 %v1011, 1.442695
    %v1013 = vpow.pop %v1012
    %1015 = vset.pattern.permute.xlu0 0
    %1016 = vperm.xlu0 %1015, %v1010
    %v1017 = vpop.permute.xlu0 %1016
    %v1019 = vsub.f32 %v1004, %v1017
    %v1020 = vmul.f32 %v1019, 1.442695
    %v1021 = vpow.pop %v1020
    %v1022 = vld [vmem:[#allocation3] sm:$0x3]
    %v1023 = vmul.f32 %v1013, %v1022
    %v1024 = vsel %vm1006, %v1021, 0.0
    %1025 = vadd.xlane.f32.xlu0 %v1024
    %v1026 = vpop.xlane.xlu0 %1025
    %v1027 = vadd.f32 %v1023, %v1026
    %vm1028 = vcmask 1024
    %1029 = vst.msk [vmem:[#allocation3] sm:$0x3] %vm1028, %v1027
    %v1032 = vunpack.c.l.s4 1966171168
    %v1033 = vunpack.c.0.s8 %v1032
    %v1034 = vlaneseq
    %v1035 = vshrl.u32 %v1034, 7
    %v1036 = vsub.s32 %v1033, %v1035
    %v1037 = vrot.slane %v1021, %v1036
    %v1038 = vcombine.high %v1037, %v1037
    %vm1039 = vcmask 523264
    %v1040 = vsel %vm1039, %v1037, 0
    %1042 = vmatprep.subr.mxu0 0.0
    %1043 = vmatpush1.msra.mxu0 %v25
    %1044 = vmatprep.subr.mxu0 0.0
    %1045 = vmatpush1.msra.mxu0 %v26
    %1046 = vmatprep.subr.mxu0 0.0
    %1047 = vmatpush1.msra.mxu0 %v27
    %1048 = vmatprep.subr.mxu0 0.0
    %1049 = vmatpush1.msra.mxu0 %v28
    %1050 = vmatprep.subr.mxu0 0.0
    %1051 = vmatpush1.msra.mxu0 %v29
    %1052 = vmatprep.subr.mxu0 0.0
    %1053 = vmatpush1.msra.mxu0 %v30
    %1054 = vmatprep.subr.mxu0 0.0
    %1055 = vmatpush1.msra.mxu0 %v31
    %1056 = vmatprep.subr.mxu0 0.0
    %1057 = vmatpush1.msra.mxu0 %v32
    %1058 = vmatprep.subr.mxu0 0.0
    %1059 = vmatpush1.msra.mxu0 0.0
    %1060 = vmatprep.subr.mxu0 0.0
    %1061 = vmatpush1.msra.mxu0 0.0
    %1062 = vmatprep.subr.mxu0 0.0
    %1063 = vmatpush1.msra.mxu0 0.0
    %1064 = vmatprep.subr.mxu0 0.0
    %1065 = vmatpush1.msra.mxu0 0.0
    %1066 = vmatprep.subr.mxu0 0.0
    %1067 = vmatpush1.msra.mxu0 0.0
    %1068 = vmatprep.subr.mxu0 0.0
    %1069 = vmatpush1.msra.mxu0 0.0
    %1070 = vmatprep.subr.mxu0 0.0
    %1071 = vmatpush1.msra.mxu0 0.0
    %1072 = vmatprep.subr.mxu0 0.0
    %1073 = vmatpush1.msra.mxu0 0.0
    %1074 = vmatprep.subr.mxu0 0.0
    %1075 = vmatpush1.msra.mxu0 0.0
    %1076 = vmatprep.subr.mxu0 0.0
    %1077 = vmatpush1.msra.mxu0 0.0
    %1078 = vmatprep.subr.mxu0 0.0
    %1079 = vmatpush1.msra.mxu0 0.0
    %1080 = vmatprep.subr.mxu0 0.0
    %1081 = vmatpush1.msra.mxu0 0.0
    %1082 = vmatprep.subr.mxu0 0.0
    %1083 = vmatpush1.msra.mxu0 0.0
    %1084 = vmatprep.subr.mxu0 0.0
    %1085 = vmatpush1.msra.mxu0 0.0
    %1086 = vmatprep.subr.mxu0 0.0
    %1087 = vmatpush1.msra.mxu0 0.0
    %1088 = vmatprep.subr.mxu0 0.0
    %1089 = vmatpush1.msra.mxu0 0.0
    %1090 = vmatprep.subr.mxu0 0.0
    %1091 = vmatpush1.msra.mxu0 0.0
    %1092 = vmatprep.subr.mxu0 0.0
    %1093 = vmatpush1.msra.mxu0 0.0
    %1094 = vmatprep.subr.mxu0 0.0
    %1095 = vmatpush1.msra.mxu0 0.0
    %1096 = vmatprep.subr.mxu0 0.0
    %1097 = vmatpush1.msra.mxu0 0.0
    %1098 = vmatprep.subr.mxu0 0.0
    %1099 = vmatpush1.msra.mxu0 0.0
    %1100 = vmatprep.subr.mxu0 0.0
    %1101 = vmatpush1.msra.mxu0 0.0
    %1102 = vmatprep.subr.mxu0 0.0
    %1103 = vmatpush1.msra.mxu0 0.0
    %1104 = vmatprep.subr.mxu0 0.0
    %1105 = vmatpush1.msra.mxu0 0.0
    %1106 = vmatprep.mubr.f32.mxu0 0.0
    %1107 = vmatmul.mubr.f32.gmra.mrb[0].mxu0 %v1040
    %v1108 = vpop.f32.mrb[0].mxu0
    %v1109 = vadd.f32 0.0, %v1108
    %v1110 = vpop.f32.mrb[0].mxu0
    %1111 = vdwg.mxu0
    %v1112 = vsel %vm1039, %v1038, 0
    %1114 = vmatprep.subr.mxu0 0.0
    %1115 = vmatpush1.msra.mxu0 %v33
    %1116 = vmatprep.subr.mxu0 0.0
    %1117 = vmatpush1.msra.mxu0 %v34
    %1118 = vmatprep.subr.mxu0 0.0
    %1119 = vmatpush1.msra.mxu0 %v35
    %1120 = vmatprep.subr.mxu0 0.0
    %1121 = vmatpush1.msra.mxu0 %v36
    %1122 = vmatprep.subr.mxu0 0.0
    %1123 = vmatpush1.msra.mxu0 %v37
    %1124 = vmatprep.subr.mxu0 0.0
    %1125 = vmatpush1.msra.mxu0 %v38
    %1126 = vmatprep.subr.mxu0 0.0
    %1127 = vmatpush1.msra.mxu0 %v39
    %1128 = vmatprep.subr.mxu0 0.0
    %1129 = vmatpush1.msra.mxu0 %v40
    %1130 = vmatprep.subr.mxu0 0.0
    %1131 = vmatpush1.msra.mxu0 0.0
    %1132 = vmatprep.subr.mxu0 0.0
    %1133 = vmatpush1.msra.mxu0 0.0
    %1134 = vmatprep.subr.mxu0 0.0
    %1135 = vmatpush1.msra.mxu0 0.0
    %1136 = vmatprep.subr.mxu0 0.0
    %1137 = vmatpush1.msra.mxu0 0.0
    %1138 = vmatprep.subr.mxu0 0.0
    %1139 = vmatpush1.msra.mxu0 0.0
    %1140 = vmatprep.subr.mxu0 0.0
    %1141 = vmatpush1.msra.mxu0 0.0
    %1142 = vmatprep.subr.mxu0 0.0
    %1143 = vmatpush1.msra.mxu0 0.0
    %1144 = vmatprep.subr.mxu0 0.0
    %1145 = vmatpush1.msra.mxu0 0.0
    %1146 = vmatprep.subr.mxu0 0.0
    %1147 = vmatpush1.msra.mxu0 0.0
    %1148 = vmatprep.subr.mxu0 0.0
    %1149 = vmatpush1.msra.mxu0 0.0
    %1150 = vmatprep.subr.mxu0 0.0
    %1151 = vmatpush1.msra.mxu0 0.0
    %1152 = vmatprep.subr.mxu0 0.0
    %1153 = vmatpush1.msra.mxu0 0.0
    %1154 = vmatprep.subr.mxu0 0.0
    %1155 = vmatpush1.msra.mxu0 0.0
    %1156 = vmatprep.subr.mxu0 0.0
    %1157 = vmatpush1.msra.mxu0 0.0
    %1158 = vmatprep.subr.mxu0 0.0
    %1159 = vmatpush1.msra.mxu0 0.0
    %1160 = vmatprep.subr.mxu0 0.0
    %1161 = vmatpush1.msra.mxu0 0.0
    %1162 = vmatprep.subr.mxu0 0.0
    %1163 = vmatpush1.msra.mxu0 0.0
    %1164 = vmatprep.subr.mxu0 0.0
    %1165 = vmatpush1.msra.mxu0 0.0
    %1166 = vmatprep.subr.mxu0 0.0
    %1167 = vmatpush1.msra.mxu0 0.0
    %1168 = vmatprep.subr.mxu0 0.0
    %1169 = vmatpush1.msra.mxu0 0.0
    %1170 = vmatprep.subr.mxu0 0.0
    %1171 = vmatpush1.msra.mxu0 0.0
    %1172 = vmatprep.subr.mxu0 0.0
    %1173 = vmatpush1.msra.mxu0 0.0
    %1174 = vmatprep.subr.mxu0 0.0
    %1175 = vmatpush1.msra.mxu0 0.0
    %1176 = vmatprep.subr.mxu0 0.0
    %1177 = vmatpush1.msra.mxu0 0.0
    %1178 = vmatprep.mubr.f32.mxu0 0.0
    %1179 = vmatmul.mubr.f32.gmra.mrb[0].mxu0 %v1112
    %v1180 = vpop.f32.mrb[0].mxu0
    %v1181 = vadd.f32 0.0, %v1180
    %v1182 = vpop.f32.mrb[0].mxu0
    %1183 = vdwg.mxu0
    %v1186 = vunpack.c.l.s4 1966171168
    %v1187 = vunpack.c.0.s8 %v1186
    %v1188 = vlaneseq
    %v1189 = vshrl.u32 %v1188, 7
    %v1190 = vsub.s32 %v1187, %v1189
    %v1191 = vrot.slane %v1013, %v1190
    %v1192 = vcombine.high %v1191, %v1191
    %v1194 = vunpack.c.l.s4 1966171168
    %v1195 = vunpack.c.0.s8 %v1194
    %v1196 = vlaneseq
    %v1197 = vshrl.u32 %v1196, 7
    %v1198 = vsub.s32 %v1195, %v1197
    %v1199 = vrot.slane %v1191, %v1198
    %v1201 = vunpack.c.l.s4 1966171168
    %v1202 = vunpack.c.0.s8 %v1201
    %v1203 = vlaneseq
    %v1204 = vshrl.u32 %v1203, 7
    %v1205 = vsub.s32 %v1202, %v1204
    %v1206 = vrot.slane %v1192, %v1205
    %v1207 = vld [vmem:[#allocation4] sm:$0x1]
    %v1208 = vld [vmem:[#allocation4 + $0x1] sm:$0x1]
    %1209 = vset.pattern.permute.xlu0 0
    %1210 = vperm.xlu0 %1209, %v1199
    %v1211 = vpop.permute.xlu0 %1210
    %v1213 = vlaneseq
    %v1214 = vshrl.u32 %v1213, 7
    %v1215 = vsub.s32 0, %v1214
    %v1216 = vrot.slane %v1211, %v1215
    %1217 = vset.pattern.permute.xlu0 0
    %1218 = vperm.xlu0 %1217, %v1206
    %v1219 = vpop.permute.xlu0 %1218
    %v1221 = vlaneseq
    %v1222 = vshrl.u32 %v1221, 7
    %v1223 = vsub.s32 0, %v1222
    %v1224 = vrot.slane %v1219, %v1223
    %v1225 = vmul.f32 %v1216, %v1207
    %v1226 = vmul.f32 %v1224, %v1208
    %v1227 = vadd.f32 %v1225, %v1109
    %v1228 = vadd.f32 %v1226, %v1181
    %vm1229 = vcmask 253952
    %1230 = vst.msk [vmem:[#allocation4] sm:$0x1] %vm1229, %v1227
    %1231 = vst.msk [vmem:[#allocation4 + $0x1] sm:$0x1] %vm1229, %v1228
    %1232 = vst.msk [vmem:[#allocation2] sm:$0x3] %vm1028, %v1010
    // Predicated region
    $region18: #{tpu_custom_call.1} parent=1 // pred_check
      %p1233 = pneg %p15
    $region19: #{tpu_custom_call.1} parent=1 // pred_check_branch
      %1235 = sbr.rel (%p1233) target = $region21
    $region20: #{tpu_custom_call.1} parent=1 // pred_region
      %v1236 = vld [vmem:[#allocation3] sm:$0x3]
      %v1237 = vrcp.pop %v1236
      %v1238 = vld [vmem:[#allocation4] sm:$0x1]
      %v1239 = vld [vmem:[#allocation4 + $0x1] sm:$0x1]
      %v1242 = vunpack.c.l.s4 1966171168
      %v1243 = vunpack.c.0.s8 %v1242
      %v1244 = vlaneseq
      %v1245 = vshrl.u32 %v1244, 7
      %v1246 = vsub.s32 %v1243, %v1245
      %v1247 = vrot.slane %v1237, %v1246
      %v1248 = vcombine.high %v1247, %v1247
      %v1250 = vunpack.c.l.s4 1966171168
      %v1251 = vunpack.c.0.s8 %v1250
      %v1252 = vlaneseq
      %v1253 = vshrl.u32 %v1252, 7
      %v1254 = vsub.s32 %v1251, %v1253
      %v1255 = vrot.slane %v1247, %v1254
      %v1257 = vunpack.c.l.s4 1966171168
      %v1258 = vunpack.c.0.s8 %v1257
      %v1259 = vlaneseq
      %v1260 = vshrl.u32 %v1259, 7
      %v1261 = vsub.s32 %v1258, %v1260
      %v1262 = vrot.slane %v1248, %v1261
      %1263 = vset.pattern.permute.xlu0 0
      %1264 = vperm.xlu0 %1263, %v1255
      %v1265 = vpop.permute.xlu0 %1264
      %v1267 = vlaneseq
      %v1268 = vshrl.u32 %v1267, 7
      %v1269 = vsub.s32 0, %v1268
      %v1270 = vrot.slane %v1265, %v1269
      %1271 = vset.pattern.permute.xlu0 0
      %1272 = vperm.xlu0 %1271, %v1262
      %v1273 = vpop.permute.xlu0 %1272
      %v1275 = vlaneseq
      %v1276 = vshrl.u32 %v1275, 7
      %v1277 = vsub.s32 0, %v1276
      %v1278 = vrot.slane %v1273, %v1277
      %v1279 = vmul.f32 %v1238, %v1270
      %v1280 = vmul.f32 %v1239, %v1278
      %v1281 = vld [vmem:[#allocation2] sm:$0x3]
      %v1284 = vunpack.c.l.s4 1966171168
      %v1285 = vunpack.c.0.s8 %v1284
      %v1286 = vlaneseq
      %v1287 = vshrl.u32 %v1286, 7
      %v1288 = vsub.s32 %v1285, %v1287
      %v1289 = vrot.slane %v1281, %v1288
      %v1290 = vcombine.high %v1289, %v1289
      %v1292 = vunpack.c.l.s4 1966171168
      %v1293 = vunpack.c.0.s8 %v1292
      %v1294 = vlaneseq
      %v1295 = vshrl.u32 %v1294, 7
      %v1296 = vsub.s32 %v1293, %v1295
      %v1297 = vrot.slane %v1289, %v1296
      %v1299 = vunpack.c.l.s4 1966171168
      %v1300 = vunpack.c.0.s8 %v1299
      %v1301 = vlaneseq
      %v1302 = vshrl.u32 %v1301, 7
      %v1303 = vsub.s32 %v1300, %v1302
      %v1304 = vrot.slane %v1290, %v1303
      %vm1307 = vcmp.gt.f32.partialorder %v1297, -5e+29
      %vm1308 = vcmp.gt.f32.partialorder %v1304, -5e+29
      %v1309 = vsel %vm1307, 1, 0
      %v1310 = vsel %vm1308, 1, 0
      %1311 = vset.pattern.permute.xlu0 0
      %1312 = vperm.xlu0 %1311, %v1309
      %v1313 = vpop.permute.xlu0 %1312
      %v1314 = vlaneseq
      %v1315 = vshrl.u32 %v1314, 7
      %v1316 = vsub.s32 0, %v1315
      %v1317 = vrot.slane %v1313, %v1316
      %1318 = vset.pattern.permute.xlu0 0
      %1319 = vperm.xlu0 %1318, %v1310
      %v1320 = vpop.permute.xlu0 %1319
      %v1321 = vlaneseq
      %v1322 = vshrl.u32 %v1321, 7
      %v1323 = vsub.s32 0, %v1322
      %v1324 = vrot.slane %v1320, %v1323
      %vm1325 = vcmp.eq.s32.totalorder %v1317, 1
      %vm1326 = vcmp.eq.s32.totalorder %v1324, 1
      %v1327 = vsel %vm1325, %v1279, nan
      %v1328 = vsel %vm1326, %v1280, nan
      %1329 = vst.msk [vmem:[#allocation5] sm:$0x1] %vm1229, %v1327
      %1330 = vst.msk [vmem:[#allocation5 + $0x1] sm:$0x1] %vm1229, %v1328
    $region21: #{tpu_custom_call.1} parent=1 // pred_fallthru
      _
    // Predicated region
    $region22: #{tpu_custom_call.1} parent=1 // pred_check
      _
    $region23: #{tpu_custom_call.1} parent=1 // pred_check_branch
      %1332 = sbr.rel (0) target = $region25
    $region24: #{tpu_custom_call.1} parent=1 // pred_region
      %s1334 = ssub.s32 32, 32
      %1335 = vsyncadd [#allocation6], %s1334
      %s1336 = sshll.u32 [#allocation5], 4
      %s1337 = int_to_ptr.vmem [resolvable:$true] %s1336
      %1342 = dma.vmem_to_hbm [thread:$0]  %s1337, 32, %s3, [#allocation6], 16, 16, 1
    $region25: #{tpu_custom_call.1} parent=1 // pred_fallthru
      _
    // Predicated region
    $region26: #{tpu_custom_call.1} parent=1 // pred_check
      _
    $region27: #{tpu_custom_call.1} parent=1 // pred_check_branch
      %1344 = sbr.rel (0) target = $region29
    $region28: #{tpu_custom_call.1} parent=1 // pred_region
      %1345 = dma.done [#allocation6], 32
    $region29: #{tpu_custom_call.1} parent=1 // pred_fallthru
      _
    %1346 = vsyncpa [#allocation6], 1

</llo_original>
